<compile_context>
chip_gen: v7x
topology: tpu7x:2x2x1
jax: 0.10.0
libtpu: 0.0.40
codegen_flags: <defaults>
</compile_context>

<pallas_src>
import jax
import jax.numpy as jnp
from jax.experimental import pallas as pl
from jax.experimental.pallas import tpu as pltpu


def gs3_kernel(w_ref, b_ref, xt_ref, o_ref):
    w = w_ref[...]                       # (6, D)
    xt = xt_ref[...]                     # (D, tn)   batch on lanes
    bias = b_ref[...]                    # (6, 1)    broadcasts across lanes

    # MXU matmul; output already has batch on the lane axis.
    u = jnp.dot(w, xt, preferred_element_type=jnp.float32) + bias  # (6, tn)

    a, b, c = u[0:1, :], u[1:2, :], u[2:3, :]    # u1 components, each (1, tn)
    d, e, f = u[3:4, :], u[4:5, :], u[5:6, :]    # u2 components

    # Gram-Schmidt: full-lane-width VPU math, rsqrt on the EUP.
    u1_sq = a * a + b * b + c * c
    dot12 = a * d + b * e + c * f
    inv1 = jax.lax.rsqrt(u1_sq)
    coef = dot12 * (inv1 * inv1)         # reuse rsqrt instead of a vector divide

    d2 = d - coef * a
    e2 = e - coef * b
    f2 = f - coef * c
    u2_sq = d2 * d2 + e2 * e2 + f2 * f2
    inv2 = jax.lax.rsqrt(u2_sq)

    e1x, e1y, e1z = a * inv1, b * inv1, c * inv1
    e2x, e2y, e2z = d2 * inv2, e2 * inv2, f2 * inv2

    # e3 = e1 x e2
    e3x = e1y * e2z - e1z * e2y
    e3y = e1z * e2x - e1x * e2z
    e3z = e1x * e2y - e1y * e2x

    # Unmasked, full-lane row stores into the (9, tn) output tile.
    o_ref[0:1, :] = e1x
    o_ref[1:2, :] = e1y
    o_ref[2:3, :] = e1z
    o_ref[3:4, :] = e2x
    o_ref[4:5, :] = e2y
    o_ref[5:6, :] = e2z
    o_ref[6:7, :] = e3x
    o_ref[7:8, :] = e3y
    o_ref[8:9, :] = e3z


def _pick_tile_n(n, d, *, vmem_budget_bytes=8 * 1024 * 1024, max_tile=8192):
    """Largest lane-tile (multiple of 128) whose double-buffered (D,tn) input
    tile + (9,tn) output tile fit the VMEM budget; safe for v7x's 64 MiB VMEM
    and v5e's 16 MiB scoped default."""
    per_lane_bytes = 2 * (d + 9) * 4          # double-buffered in + out, f32
    cap = vmem_budget_bytes // per_lane_bytes
    cap = max(128, (cap // 128) * 128)
    cap = min(cap, max_tile)
    if n <= cap:
        return n                               # single full-extent block (always legal)
    return cap


def gs3_forward(x, weight, bias, *, tile_n=None):
    """x: (..., D) f32; weight: (6, D) (PyTorch nn.Linear layout); bias: (6,).
    Returns (..., 3, 3) with rows (e1, e2, e3)."""
    *batch, D = x.shape
    x2 = x.reshape(-1, D)
    N = x2.shape[0]

    if tile_n is None:
        tile_n = _pick_tile_n(N, D)

    xt = x2.T                                  # (D, N): batch on the lane axis
    b2 = bias.reshape(6, 1)
    grid_n = pl.cdiv(N, tile_n)

    # Free scheduling hint: kernel is HBM-bandwidth-bound, not MXU-bound.
    cost = pl.CostEstimate(
        flops=2 * N * D * 6 + 40 * N,
        transcendentals=2 * N,
        bytes_accessed=4 * (N * (D + 9) + 6 * D + 6),
    )

    out9t = pl.pallas_call(
        gs3_kernel,
        out_shape=jax.ShapeDtypeStruct((9, N), jnp.float32),
        grid_spec=pltpu.PrefetchScalarGridSpec(
            num_scalar_prefetch=0,
            grid=(grid_n,),
            in_specs=[
                pl.BlockSpec((6, D), lambda i: (0, 0)),        # W, resident
                pl.BlockSpec((6, 1), lambda i: (0, 0)),        # bias, resident
                pl.BlockSpec((D, tile_n), lambda i: (0, i)),   # xT lane tiles
            ],
            out_specs=pl.BlockSpec((9, tile_n), lambda i: (0, i)),
        ),
        compiler_params=pltpu.CompilerParams(
            dimension_semantics=("parallel",),     # lets v7x shard tiles over 2 TCs
            vmem_limit_bytes=32 * 1024 * 1024,
        ),
        cost_estimate=cost,
    )(weight, b2, xt)

    return out9t.T.reshape(*batch, 3, 3)


def gs3_reference(x, weight, bias):
    u = x @ weight.T + bias
    u1 = u[..., :3]
    u2 = u[..., 3:]
    u1_norm = (u1 * u1).sum(-1)
    u2 = u2 - ((u1 * u2).sum(-1) / u1_norm)[..., None] * u1
    u2_norm = (u2 * u2).sum(-1)
    e1 = u1 / jnp.sqrt(u1_norm)[..., None]
    e2 = u2 / jnp.sqrt(u2_norm)[..., None]
    e3 = jnp.cross(e1, e2)
    return jnp.stack([e1, e2, e3], axis=-2)


if __name__ == "__main__":
    key = jax.random.PRNGKey(0)
    k_x, k_w, k_b, k_x2 = jax.random.split(key, 4)

    N, D = 8, 32   # batch=8, input_dims=32

    x = jax.random.normal(k_x, (N, D), dtype=jnp.float32)
    # Deterministic "nn.Linear(input_dims, 6)"-style init.
    bound = 1.0 / (D ** 0.5)
    weight = jax.random.uniform(k_w, (6, D), jnp.float32, -bound, bound)
    bias = jax.random.uniform(k_b, (6,), jnp.float32, -bound, bound)

    out = gs3_forward(x, weight, bias)
    jax.block_until_ready(out)
    ref = gs3_reference(x, weight, bias)
    assert out.shape == (N, 3, 3)
    assert jnp.allclose(out, ref, atol=1e-5, rtol=1e-5), "mismatch vs reference"

    # Second check: arbitrary leading batch dims (flattened internally).
    x_b = jax.random.normal(k_x2, (2, 5, D), dtype=jnp.float32)
    out_b = gs3_forward(x_b, weight, bias)
    jax.block_until_ready(out_b)
    ref_b = gs3_reference(x_b, weight, bias)
    assert out_b.shape == (2, 5, 3, 3)
    assert jnp.allclose(out_b, ref_b, atol=1e-5, rtol=1e-5), "batched mismatch"

    print("KERNEL_OK")
</pallas_src>

<mosaic_0001>
module attributes {stable_mosaic.version = 11 : i64} {
  func.func @gs3_kernel(%arg0: i32, %arg1: memref<6x32xf32, #tpu.memory_space<vmem>>, %arg2: memref<6x1xf32, #tpu.memory_space<vmem>>, %arg3: memref<32x8xf32, #tpu.memory_space<vmem>>, %arg4: memref<9x8xf32, #tpu.memory_space<vmem>>) attributes {dimension_semantics = [#tpu.dimension_semantics<parallel>], iteration_bounds = array<i64: 1>, scalar_prefetch = 0 : i64, scratch_operands = 0 : i64, tpu.core_type = #tpu.core_type<tc>, window_params = [{pipeline_mode = #tpu.pipeline_mode<synchronous>, transform_indices = @transform_0, window_bounds = array<i64: 6, 32>}, {pipeline_mode = #tpu.pipeline_mode<synchronous>, transform_indices = @transform_1, window_bounds = array<i64: 6, 1>}, {transform_indices = @transform_2, window_bounds = array<i64: 32, 8>}, {transform_indices = @transform_3, window_bounds = array<i64: 9, 8>}]} {
    %c0 = arith.constant 0 : index
    %c0_0 = arith.constant 0 : index
    %0 = vector.load %arg1[%c0, %c0_0] : memref<6x32xf32, #tpu.memory_space<vmem>>, vector<6x32xf32>
    %c0_1 = arith.constant 0 : index
    %c0_2 = arith.constant 0 : index
    %1 = vector.load %arg3[%c0_1, %c0_2] : memref<32x8xf32, #tpu.memory_space<vmem>>, vector<32x8xf32>
    %c0_3 = arith.constant 0 : index
    %c0_4 = arith.constant 0 : index
    %2 = vector.load %arg2[%c0_3, %c0_4] : memref<6x1xf32, #tpu.memory_space<vmem>>, vector<6x1xf32>
    %cst = arith.constant dense<0.000000e+00> : vector<6x8xf32>
    %3 = tpu.matmul %0, %1, %cst {dimension_numbers = #tpu.dot_dimension_numbers<[1], [0], [0], [1], [0, 0, 1, 1], [], []>} : vector<6x32xf32>, vector<32x8xf32>, vector<6x8xf32> -> vector<6x8xf32>
    %4 = vector.broadcast %2 : vector<6x1xf32> to vector<6x8xf32>
    %5 = arith.addf %3, %4 : vector<6x8xf32>
    %6 = vector.extract_strided_slice %5 {offsets = [0, 0], sizes = [1, 8], strides = [1, 1]} : vector<6x8xf32> to vector<1x8xf32>
    %7 = vector.extract_strided_slice %5 {offsets = [1, 0], sizes = [1, 8], strides = [1, 1]} : vector<6x8xf32> to vector<1x8xf32>
    %8 = vector.extract_strided_slice %5 {offsets = [2, 0], sizes = [1, 8], strides = [1, 1]} : vector<6x8xf32> to vector<1x8xf32>
    %9 = vector.extract_strided_slice %5 {offsets = [3, 0], sizes = [1, 8], strides = [1, 1]} : vector<6x8xf32> to vector<1x8xf32>
    %10 = vector.extract_strided_slice %5 {offsets = [4, 0], sizes = [1, 8], strides = [1, 1]} : vector<6x8xf32> to vector<1x8xf32>
    %11 = vector.extract_strided_slice %5 {offsets = [5, 0], sizes = [1, 8], strides = [1, 1]} : vector<6x8xf32> to vector<1x8xf32>
    %12 = arith.mulf %6, %6 : vector<1x8xf32>
    %13 = arith.mulf %7, %7 : vector<1x8xf32>
    %14 = arith.addf %12, %13 : vector<1x8xf32>
    %15 = arith.mulf %8, %8 : vector<1x8xf32>
    %16 = arith.addf %14, %15 : vector<1x8xf32>
    %17 = arith.mulf %6, %9 : vector<1x8xf32>
    %18 = arith.mulf %7, %10 : vector<1x8xf32>
    %19 = arith.addf %17, %18 : vector<1x8xf32>
    %20 = arith.mulf %8, %11 : vector<1x8xf32>
    %21 = arith.addf %19, %20 : vector<1x8xf32>
    %22 = math.rsqrt %16 : vector<1x8xf32>
    %23 = arith.mulf %22, %22 : vector<1x8xf32>
    %24 = arith.mulf %21, %23 : vector<1x8xf32>
    %25 = arith.mulf %24, %6 : vector<1x8xf32>
    %26 = arith.subf %9, %25 : vector<1x8xf32>
    %27 = arith.mulf %24, %7 : vector<1x8xf32>
    %28 = arith.subf %10, %27 : vector<1x8xf32>
    %29 = arith.mulf %24, %8 : vector<1x8xf32>
    %30 = arith.subf %11, %29 : vector<1x8xf32>
    %31 = arith.mulf %26, %26 : vector<1x8xf32>
    %32 = arith.mulf %28, %28 : vector<1x8xf32>
    %33 = arith.addf %31, %32 : vector<1x8xf32>
    %34 = arith.mulf %30, %30 : vector<1x8xf32>
    %35 = arith.addf %33, %34 : vector<1x8xf32>
    %36 = math.rsqrt %35 : vector<1x8xf32>
    %37 = arith.mulf %6, %22 : vector<1x8xf32>
    %38 = arith.mulf %7, %22 : vector<1x8xf32>
    %39 = arith.mulf %8, %22 : vector<1x8xf32>
    %40 = arith.mulf %26, %36 : vector<1x8xf32>
    %41 = arith.mulf %28, %36 : vector<1x8xf32>
    %42 = arith.mulf %30, %36 : vector<1x8xf32>
    %43 = arith.mulf %38, %42 : vector<1x8xf32>
    %44 = arith.mulf %39, %41 : vector<1x8xf32>
    %45 = arith.subf %43, %44 : vector<1x8xf32>
    %46 = arith.mulf %39, %40 : vector<1x8xf32>
    %47 = arith.mulf %37, %42 : vector<1x8xf32>
    %48 = arith.subf %46, %47 : vector<1x8xf32>
    %49 = arith.mulf %37, %41 : vector<1x8xf32>
    %50 = arith.mulf %38, %40 : vector<1x8xf32>
    %51 = arith.subf %49, %50 : vector<1x8xf32>
    %c0_5 = arith.constant 0 : index
    %c0_6 = arith.constant 0 : index
    %52 = vector.load %arg4[%c0_5, %c0_6] : memref<9x8xf32, #tpu.memory_space<vmem>>, vector<1x8xf32>
    tpu.vector_store %arg4[%c0_5, %c0_6], %37 {strides = array<i32>} : memref<9x8xf32, #tpu.memory_space<vmem>>, vector<1x8xf32>,
    %c1 = arith.constant 1 : index
    %c0_7 = arith.constant 0 : index
    %53 = vector.load %arg4[%c1, %c0_7] : memref<9x8xf32, #tpu.memory_space<vmem>>, vector<1x8xf32>
    tpu.vector_store %arg4[%c1, %c0_7], %38 {strides = array<i32>} : memref<9x8xf32, #tpu.memory_space<vmem>>, vector<1x8xf32>,
    %c2 = arith.constant 2 : index
    %c0_8 = arith.constant 0 : index
    %54 = vector.load %arg4[%c2, %c0_8] : memref<9x8xf32, #tpu.memory_space<vmem>>, vector<1x8xf32>
    tpu.vector_store %arg4[%c2, %c0_8], %39 {strides = array<i32>} : memref<9x8xf32, #tpu.memory_space<vmem>>, vector<1x8xf32>,
    %c3 = arith.constant 3 : index
    %c0_9 = arith.constant 0 : index
    %55 = vector.load %arg4[%c3, %c0_9] : memref<9x8xf32, #tpu.memory_space<vmem>>, vector<1x8xf32>
    tpu.vector_store %arg4[%c3, %c0_9], %40 {strides = array<i32>} : memref<9x8xf32, #tpu.memory_space<vmem>>, vector<1x8xf32>,
    %c4 = arith.constant 4 : index
    %c0_10 = arith.constant 0 : index
    %56 = vector.load %arg4[%c4, %c0_10] : memref<9x8xf32, #tpu.memory_space<vmem>>, vector<1x8xf32>
    tpu.vector_store %arg4[%c4, %c0_10], %41 {strides = array<i32>} : memref<9x8xf32, #tpu.memory_space<vmem>>, vector<1x8xf32>,
    %c5 = arith.constant 5 : index
    %c0_11 = arith.constant 0 : index
    %57 = vector.load %arg4[%c5, %c0_11] : memref<9x8xf32, #tpu.memory_space<vmem>>, vector<1x8xf32>
    tpu.vector_store %arg4[%c5, %c0_11], %42 {strides = array<i32>} : memref<9x8xf32, #tpu.memory_space<vmem>>, vector<1x8xf32>,
    %c6 = arith.constant 6 : index
    %c0_12 = arith.constant 0 : index
    %58 = vector.load %arg4[%c6, %c0_12] : memref<9x8xf32, #tpu.memory_space<vmem>>, vector<1x8xf32>
    tpu.vector_store %arg4[%c6, %c0_12], %45 {strides = array<i32>} : memref<9x8xf32, #tpu.memory_space<vmem>>, vector<1x8xf32>,
    %c7 = arith.constant 7 : index
    %c0_13 = arith.constant 0 : index
    %59 = vector.load %arg4[%c7, %c0_13] : memref<9x8xf32, #tpu.memory_space<vmem>>, vector<1x8xf32>
    tpu.vector_store %arg4[%c7, %c0_13], %48 {strides = array<i32>} : memref<9x8xf32, #tpu.memory_space<vmem>>, vector<1x8xf32>,
    %c8 = arith.constant 8 : index
    %c0_14 = arith.constant 0 : index
    %60 = vector.load %arg4[%c8, %c0_14] : memref<9x8xf32, #tpu.memory_space<vmem>>, vector<1x8xf32>
    tpu.vector_store %arg4[%c8, %c0_14], %51 {strides = array<i32>} : memref<9x8xf32, #tpu.memory_space<vmem>>, vector<1x8xf32>,
    return
  }
  func.func @transform_0(%arg0: i32) -> (i32, i32) {
    %c0_i32 = arith.constant 0 : i32
    %c0_i32_0 = arith.constant 0 : i32
    %c0_i32_1 = arith.constant 0 : i32
    return %c0_i32, %c0_i32_0 : i32, i32
  }
  func.func @transform_1(%arg0: i32) -> (i32, i32) {
    %c0_i32 = arith.constant 0 : i32
    %c0_i32_0 = arith.constant 0 : i32
    %c0_i32_1 = arith.constant 0 : i32
    return %c0_i32, %c0_i32_0 : i32, i32
  }
  func.func @transform_2(%arg0: i32) -> (i32, i32) {
    %c0_i32 = arith.constant 0 : i32
    %c0_i32_0 = arith.constant 0 : i32
    return %c0_i32, %arg0 : i32, i32
  }
  func.func @transform_3(%arg0: i32) -> (i32, i32) {
    %c0_i32 = arith.constant 0 : i32
    %c0_i32_0 = arith.constant 0 : i32
    return %c0_i32, %arg0 : i32, i32
  }
}

</mosaic_0001>

<llo_original>
// kernel: tpu_custom_call.1
$region0: #{tpu_custom_call.1}
  #allocation0 [shape = 'u32[]', space=smem, size = 0x4, offset = 0x4, fixed_abs, tag = 'smem constant byte address 0x4 - core index']
  #allocation1 [shape = 'u32[144,128]{1,0:T(1,128)}', space=vmem, size = 0x12000, scoped, tag = 'internal scratch']
  %s0 = inlined_call_operand.vmem [shape: f32[6,32], index: 0, kind: input, shape index: {}]
  %s1 = inlined_call_operand.vmem [shape: f32[6,1], index: 1, kind: input, shape index: {}]
  %s2 = inlined_call_operand.vmem [shape: f32[32,8], index: 2, kind: input, shape index: {}]
  %s3 = inlined_call_operand.vmem [shape: f32[9,8], index: 3, kind: output, shape index: {}]
  %s4 = sld [smem:[#allocation0]]
  $region22: #{tpu_custom_call.1} parent=0
    _
  %s6 = ssub.s32 1, %s4
  %s7 = scalar_select 0, %s6, %s4
  // Predicated region
  $region2: #{tpu_custom_call.1} parent=0 // pred_check
    _
  $region3: #{tpu_custom_call.1} parent=0 // pred_check_branch
    %9 = sbr.rel (0) target = $region5
  $region4: #{tpu_custom_call.1} parent=0 // pred_region
    _
  $region5: #{tpu_custom_call.1} parent=0 // pred_fallthru
    _
  // Predicated region
  $region6: #{tpu_custom_call.1} parent=0 // pred_check
    _
  $region7: #{tpu_custom_call.1} parent=0 // pred_check_branch
    %11 = sbr.rel (0) target = $region9
  $region8: #{tpu_custom_call.1} parent=0 // pred_region
    _
  $region9: #{tpu_custom_call.1} parent=0 // pred_fallthru
    _
  // Predicated region
  $region10: #{tpu_custom_call.1} parent=0 // pred_check
    _
  $region11: #{tpu_custom_call.1} parent=0 // pred_check_branch
    %13 = sbr.rel (0) target = $region13
  $region12: #{tpu_custom_call.1} parent=0 // pred_region
    _
  $region13: #{tpu_custom_call.1} parent=0 // pred_fallthru
    _
  %v14 = vld [vmem:[%s0] sm:$0x3f]
  %v15 = vld [vmem:[%s2] sm:$0xff]
  %v16 = vld [vmem:[%s2 + $0x8] sm:$0xff]
  %v17 = vld [vmem:[%s2 + $0x10] sm:$0xff]
  %v18 = vld [vmem:[%s2 + $0x18] sm:$0xff]
  %v19 = vld [vmem:[%s1] sm:$0x3f]
  %21 = vset.pattern.permute.xlu0 0
  %22 = vperm.xlu0 %21, %v19
  %v23 = vpop.permute.xlu0 %22
  %vm25 = vcmask 261120
  %v27 = vsel %vm25, %v14, 0
  %29 = vmatprep.subr.mxu0 0.0
  %30 = vmatpush1.msra.mxu0 %v15
  %31 = vmatprep.subr.mxu0 0.0
  %32 = vmatpush1.msra.mxu0 %v16
  %33 = vmatprep.subr.mxu0 0.0
  %34 = vmatpush1.msra.mxu0 %v17
  %35 = vmatprep.subr.mxu0 0.0
  %36 = vmatpush1.msra.mxu0 %v18
  %37 = vmatprep.subr.mxu0 0.0
  %38 = vmatpush1.msra.mxu0 0.0
  %39 = vmatprep.subr.mxu0 0.0
  %40 = vmatpush1.msra.mxu0 0.0
  %41 = vmatprep.subr.mxu0 0.0
  %42 = vmatpush1.msra.mxu0 0.0
  %43 = vmatprep.subr.mxu0 0.0
  %44 = vmatpush1.msra.mxu0 0.0
  %45 = vmatprep.subr.mxu0 0.0
  %46 = vmatpush1.msra.mxu0 0.0
  %47 = vmatprep.subr.mxu0 0.0
  %48 = vmatpush1.msra.mxu0 0.0
  %49 = vmatprep.subr.mxu0 0.0
  %50 = vmatpush1.msra.mxu0 0.0
  %51 = vmatprep.subr.mxu0 0.0
  %52 = vmatpush1.msra.mxu0 0.0
  %53 = vmatprep.subr.mxu0 0.0
  %54 = vmatpush1.msra.mxu0 0.0
  %55 = vmatprep.subr.mxu0 0.0
  %56 = vmatpush1.msra.mxu0 0.0
  %57 = vmatprep.subr.mxu0 0.0
  %58 = vmatpush1.msra.mxu0 0.0
  %59 = vmatprep.subr.mxu0 0.0
  %60 = vmatpush1.msra.mxu0 0.0
  %61 = vmatprep.subr.mxu0 0.0
  %62 = vmatpush1.msra.mxu0 0.0
  %63 = vmatprep.subr.mxu0 0.0
  %64 = vmatpush1.msra.mxu0 0.0
  %65 = vmatprep.subr.mxu0 0.0
  %66 = vmatpush1.msra.mxu0 0.0
  %67 = vmatprep.subr.mxu0 0.0
  %68 = vmatpush1.msra.mxu0 0.0
  %69 = vmatprep.subr.mxu0 0.0
  %70 = vmatpush1.msra.mxu0 0.0
  %71 = vmatprep.subr.mxu0 0.0
  %72 = vmatpush1.msra.mxu0 0.0
  %73 = vmatprep.subr.mxu0 0.0
  %74 = vmatpush1.msra.mxu0 0.0
  %75 = vmatprep.subr.mxu0 0.0
  %76 = vmatpush1.msra.mxu0 0.0
  %77 = vmatprep.subr.mxu0 0.0
  %78 = vmatpush1.msra.mxu0 0.0
  %79 = vmatprep.subr.mxu0 0.0
  %80 = vmatpush1.msra.mxu0 0.0
  %81 = vmatprep.subr.mxu0 0.0
  %82 = vmatpush1.msra.mxu0 0.0
  %83 = vmatprep.subr.mxu0 0.0
  %84 = vmatpush1.msra.mxu0 0.0
  %85 = vmatprep.subr.mxu0 0.0
  %86 = vmatpush1.msra.mxu0 0.0
  %87 = vmatprep.subr.mxu0 0.0
  %88 = vmatpush1.msra.mxu0 0.0
  %89 = vmatprep.subr.mxu0 0.0
  %90 = vmatpush1.msra.mxu0 0.0
  %91 = vmatprep.subr.mxu0 0.0
  %92 = vmatpush1.msra.mxu0 0.0
  %93 = vmatprep.mubr.f32.mxu0 0.0
  %94 = vmatmul.mubr.f32.gmra.mrb[0].mxu0 %v27
  %v95 = vpop.f32.mrb[0].mxu0
  %v96 = vadd.f32 %v23, %v95
  %v97 = vpop.f32.mrb[0].mxu0
  %98 = vdwg.mxu0
  %v99 = vmul.f32 %v96, %v96
  %v101 = vrot.slane %v99, 1
  %v103 = vadd.f32 %v99, %v101
  %v104 = vrot.slane %v99, 2
  %v106 = vadd.f32 %v103, %v104
  %v108 = vrot.slane %v96, 3
  %v110 = vmul.f32 %v96, %v108
  %v112 = vrot.slane %v110, 1
  %v114 = vadd.f32 %v110, %v112
  %v115 = vrot.slane %v110, 2
  %v117 = vadd.f32 %v114, %v115
  %v118 = vrsqrt.pop %v106
  %v119 = vmul.f32 %v118, %v118
  %v120 = vmul.f32 %v117, %v119
  %v121 = vmul.f32 %v120, %v96
  %v123 = vrot.slane %v121, 5
  %v125 = vsub.f32 %v96, %v123
  %v126 = vrot.slane %v96, 1
  %v128 = vmul.f32 %v120, %v126
  %v130 = vrot.slane %v128, 4
  %v132 = vsub.f32 %v96, %v130
  %v133 = vrot.slane %v96, 2
  %v135 = vmul.f32 %v120, %v133
  %v137 = vrot.slane %v135, 3
  %v139 = vsub.f32 %v96, %v137
  %v140 = vmul.f32 %v125, %v125
  %v141 = vmul.f32 %v132, %v132
  %v143 = vrot.slane %v141, 1
  %v145 = vadd.f32 %v140, %v143
  %v146 = vmul.f32 %v139, %v139
  %v148 = vrot.slane %v146, 2
  %v150 = vadd.f32 %v145, %v148
  %v151 = vrsqrt.pop %v150
  %v152 = vmul.f32 %v96, %v118
  %v154 = vrot.slane %v118, 7
  %v156 = vmul.f32 %v96, %v154
  %v157 = vrot.slane %v118, 6
  %v159 = vmul.f32 %v96, %v157
  %v160 = vmul.f32 %v125, %v151
  %v162 = vrot.slane %v151, 7
  %v164 = vmul.f32 %v132, %v162
  %v165 = vrot.slane %v151, 6
  %v167 = vmul.f32 %v139, %v165
  %v169 = vrot.slane %v167, 4
  %v171 = vmul.f32 %v156, %v169
  %v173 = vrot.slane %v164, 2
  %v175 = vmul.f32 %v159, %v173
  %v177 = vrot.slane %v175, 1
  %v179 = vsub.f32 %v171, %v177
  %v181 = vrot.slane %v160, 1
  %v183 = vmul.f32 %v159, %v181
  %v184 = vrot.slane %v167, 5
  %v186 = vmul.f32 %v152, %v184
  %v188 = vrot.slane %v186, 6
  %v190 = vsub.f32 %v183, %v188
  %v191 = vrot.slane %v164, 4
  %v193 = vmul.f32 %v152, %v191
  %v194 = vrot.slane %v160, 2
  %v196 = vmul.f32 %v156, %v194
  %v198 = vrot.slane %v196, 1
  %v200 = vsub.f32 %v193, %v198
  %vm201 = vcmask 57344
  %202 = vst.msk [vmem:[%s3] sm:$0x1] %vm201, %v152
  %vm203 = vcmask 58369
  %204 = vst.msk [vmem:[%s3] sm:$0x2] %vm203, %v156
  %vm205 = vcmask 59394
  %206 = vst.msk [vmem:[%s3] sm:$0x4] %vm205, %v159
  %vm207 = vcmask 60419
  %208 = vst.msk [vmem:[%s3] sm:$0x8] %vm207, %v160
  %vm209 = vcmask 61444
  %210 = vst.msk [vmem:[%s3] sm:$0x10] %vm209, %v164
  %vm211 = vcmask 62469
  %212 = vst.msk [vmem:[%s3] sm:$0x20] %vm211, %v167
  %213 = vst.msk [vmem:[%s3 + $0x5] sm:$0x2] %vm203, %v179
  %214 = vst.msk [vmem:[%s3 + $0x5] sm:$0x4] %vm205, %v190
  %215 = vst.msk [vmem:[%s3 + $0x8] sm:$0x1] %vm201, %v200
  // Predicated region
  $region14: #{tpu_custom_call.1} parent=0 // pred_check
    _
  $region15: #{tpu_custom_call.1} parent=0 // pred_check_branch
    %217 = sbr.rel (0) target = $region17
  $region16: #{tpu_custom_call.1} parent=0 // pred_region
    _
  $region17: #{tpu_custom_call.1} parent=0 // pred_fallthru
    _
  // Predicated region
  $region18: #{tpu_custom_call.1} parent=0 // pred_check
    _
  $region19: #{tpu_custom_call.1} parent=0 // pred_check_branch
    %219 = sbr.rel (0) target = $region21
  $region20: #{tpu_custom_call.1} parent=0 // pred_region
    _
  $region21: #{tpu_custom_call.1} parent=0 // pred_fallthru
    _

</llo_original>
